<compile_context>
chip_gen: v5e
topology: v5e:2x2
jax: 0.10.0
libtpu: 0.0.40
codegen_flags: <defaults>
</compile_context>

<pallas_src>
import jax
import jax.numpy as jnp
from jax import lax
from jax.experimental import pallas as pl
from jax.experimental.pallas import tpu as pltpu


def _round_up(x, m):
    return ((x + m - 1) // m) * m


def _device_kind():
    try:
        return jax.devices()[0].device_kind.lower()
    except Exception:
        return ""


def _make_focal_sums_kernel(rows, lanes, tr, steps):
    """Build the kernel computing per-core-chunk partial sums (loss, num_pos)."""
    groups = tr // 8

    def kernel(pred_ref, gt_ref, loss_ref, npos_ref, loss_acc, pos_acc):
        c = pl.program_id(0)          # core chunk ("parallel")
        i = pl.program_id(1)          # row-tile step ("arbitrary" reduction)

        @pl.when(i == 0)
        def _():
            loss_acc[...] = jnp.zeros_like(loss_acc)
            pos_acc[...] = jnp.zeros_like(pos_acc)

        # Valid rows remaining in this *logical* block (rows/tr/steps static).
        rem = rows - (c * steps + i) * tr

        def accumulate(pred, gt):
            pos = gt == 1.0                       # gt.eq(1)
            one_m_pred = 1.0 - pred
            # max(1-gt, 0) == (1-gt) for gt<=1 and 0 for gt>1, i.e. it folds
            # the reference's gt.lt(1) mask into the neg weight for free.
            gt_w = jnp.maximum(1.0 - gt, 0.0)
            # Both branch weights are squares: pos (1-p)^2, neg p^2 (1-gt)^4.
            b = jnp.where(pos, one_m_pred, pred * (gt_w * gt_w))
            x = jnp.where(pos, pred, one_m_pred)  # select-before-log
            contrib = jnp.log(x) * (b * b)
            # Fold (tr, lanes) -> (8, lanes): pure VALU adds, no cross-lane.
            loss_acc[...] += contrib.reshape(groups, 8, lanes).sum(axis=0)
            pos_acc[...] += pos.astype(jnp.float32).reshape(
                groups, 8, lanes).sum(axis=0)

        @pl.when(rem >= tr)            # full tile: lean path, no masking
        def _():
            accumulate(pred_ref[...].astype(jnp.float32),
                       gt_ref[...].astype(jnp.float32))

        @pl.when(jnp.logical_and(rem > 0, rem < tr))
        def _():
            # Ragged last tile: Pallas' implicit padding rows are UNDEFINED,
            # so mask them to (pred=0, gt=0) which contributes exactly 0 to
            # both sums (select happens before the log -> no NaN hazard).
            row = lax.broadcasted_iota(jnp.int32, (tr, lanes), 0)
            valid = row < rem
            accumulate(jnp.where(valid, pred_ref[...].astype(jnp.float32), 0.0),
                       jnp.where(valid, gt_ref[...].astype(jnp.float32), 0.0))

        @pl.when(i == pl.num_programs(1) - 1)
        def _():
            loss_ref[0, 0] = jnp.sum(loss_acc[...])
            npos_ref[0, 0] = jnp.sum(pos_acc[...])

    return kernel


def focal_loss_pallas(pred, gt, *, lanes=512, max_tile_rows=None, num_par=None):
    """Equivalent to FocalLoss().forward(pred, gt) from the PyTorch module."""
    assert pred.shape == gt.shape
    n = pred.size

    kind = _device_kind()
    if num_par is None:
        # TODO(synk): verify in a v7x trace that the leading "parallel" axis
        # really shards across both TensorCores (each gets its own scratch).
        num_par = 2 if "v7" in kind else 1            # v5e / v6e: single TC
    if max_tile_rows is None:
        max_tile_rows = 2048 if ("v6" in kind or "v7" in kind) else 1024

    flat_pred = pred.reshape(-1)
    flat_gt = gt.reshape(-1)

    # Pick a lane width that divides n so the 2-D view is a free reshape and
    # the kernel streams the original buffers directly (no jnp.pad copy).
    for cand in (lanes, 256, 128):
        if n % cand == 0:
            lanes = cand
            break
    else:
        # TODO(synk): rare ragged case (n not a multiple of 128) still pays one
        # copy for a tiny pad; pred=0 / gt=0 padding contributes exactly 0.
        pad = lanes - (n % lanes)
        flat_pred = jnp.pad(flat_pred, (0, pad))
        flat_gt = jnp.pad(flat_gt, (0, pad))

    rows = flat_pred.size // lanes
    pred2d = flat_pred.reshape(rows, lanes)
    gt2d = flat_gt.reshape(rows, lanes)

    # Row-tile size: multiple of 32 (f32/bf16/int8 sublane-safe), ~2-4 MiB of
    # f32 per input block so per-grid-step overhead (~0.35 us) is negligible.
    max_tile_rows = max(32, (max_tile_rows * 512) // lanes)
    tr = min(max_tile_rows, _round_up(rows, 32))
    total_blocks = pl.cdiv(rows, tr)
    if total_blocks < 2:
        num_par = 1
    steps = pl.cdiv(total_blocks, num_par)

    if num_par * steps == total_blocks:
        in_index_map = lambda c, i: (c * steps + i, 0)
    else:
        # Over-range blocks of the last core chunk re-read the final block;
        # the kernel sees rem <= 0 for them and skips all accumulation.
        in_index_map = lambda c, i: (jnp.minimum(c * steps + i, total_blocks - 1), 0)

    in_spec = pl.BlockSpec((tr, lanes), in_index_map)
    smem_spec = pl.BlockSpec((1, 1), lambda c, i: (c, 0),
                             memory_space=pltpu.MemorySpace.SMEM)
    out_scalar = jax.ShapeDtypeStruct((num_par, 1), jnp.float32)

    bytes_accessed = (pred2d.size * pred2d.dtype.itemsize
                      + gt2d.size * gt2d.dtype.itemsize)

    loss_part, npos_part = pl.pallas_call(
        _make_focal_sums_kernel(rows, lanes, tr, steps),
        out_shape=(out_scalar, out_scalar),
        grid_spec=pltpu.PrefetchScalarGridSpec(
            num_scalar_prefetch=0,
            grid=(num_par, steps),
            in_specs=[in_spec, in_spec],
            out_specs=[smem_spec, smem_spec],
            scratch_shapes=[
                pltpu.VMEM((8, lanes), jnp.float32),
                pltpu.VMEM((8, lanes), jnp.float32),
            ],
        ),
        compiler_params=pltpu.CompilerParams(
            dimension_semantics=("parallel", "arbitrary"),
            vmem_limit_bytes=32 * 1024 * 1024),
        cost_estimate=pl.CostEstimate(
            flops=11 * rows * lanes,
            transcendentals=rows * lanes,
            bytes_accessed=bytes_accessed),
    )(pred2d, gt2d)

    total = jnp.sum(loss_part)     # pos_loss + neg_loss (pos part is 0 if num_pos==0)
    num_pos = jnp.sum(npos_part)

    # loss = -neg_loss            if num_pos == 0   (== -total in that case)
    #        -(pos+neg)/num_pos   otherwise
    return jnp.where(num_pos == 0, -total, -total / jnp.maximum(num_pos, 1.0))


def _focal_loss_ref(pred, gt):
    pred = pred.astype(jnp.float32)
    gt = gt.astype(jnp.float32)
    pos_inds = (gt == 1.0).astype(jnp.float32)
    neg_inds = (gt < 1.0).astype(jnp.float32)
    neg_weights = (1.0 - gt) ** 4
    pos_loss = jnp.log(pred) * (1.0 - pred) ** 2 * pos_inds
    neg_loss = jnp.log(1.0 - pred) * pred ** 2 * neg_weights * neg_inds
    num_pos = pos_inds.sum()
    pos_loss = pos_loss.sum()
    neg_loss = neg_loss.sum()
    return jnp.where(num_pos == 0, -neg_loss,
                     -(pos_loss + neg_loss) / jnp.maximum(num_pos, 1.0))


if __name__ == "__main__":
    # FocalLoss has no learned parameters; only construct inputs.
    key = jax.random.PRNGKey(0)
    k1, k2, k3 = jax.random.split(key, 3)

    B, C, H, W = 2, 4, 16, 16   # NCHW, 2048 elements

    # pred: probabilities in (0, 1) (e.g. sigmoid of logits)
    pred = jax.nn.sigmoid(jax.random.normal(k1, (B, C, H, W), dtype=jnp.float32))
    # gt: heatmap in [0, 1) with a few exact 1.0 peaks (positive locations)
    gt = jax.random.uniform(k2, (B, C, H, W), dtype=jnp.float32) * 0.95
    peaks = jax.random.uniform(k3, (B, C, H, W)) < 0.02
    gt = jnp.where(peaks, jnp.float32(1.0), gt)

    loss = focal_loss_pallas(pred, gt)
    jax.block_until_ready(loss)

    ref = _focal_loss_ref(pred, gt)
    assert jnp.allclose(loss, ref, rtol=1e-5, atol=1e-5), (loss, ref)

    print("KERNEL_OK")
</pallas_src>

<mosaic_0001>
module attributes {stable_mosaic.version = 11 : i64} {
  func.func @kernel(%arg0: i32, %arg1: i32, %arg2: memref<32x512xf32, #tpu.memory_space<vmem>>, %arg3: memref<32x512xf32, #tpu.memory_space<vmem>>, %arg4: memref<1x1xf32, #tpu.memory_space<smem>>, %arg5: memref<1x1xf32, #tpu.memory_space<smem>>, %arg6: memref<8x512xf32, #tpu.memory_space<vmem>>, %arg7: memref<8x512xf32, #tpu.memory_space<vmem>>) attributes {dimension_semantics = [#tpu.dimension_semantics<parallel>, #tpu.dimension_semantics<arbitrary>], iteration_bounds = array<i64: 1, 1>, scalar_prefetch = 0 : i64, scratch_operands = 2 : i64, tpu.core_type = #tpu.core_type<tc>, window_params = [{transform_indices = @transform_0, window_bounds = array<i64: 32, 512>}, {transform_indices = @transform_1, window_bounds = array<i64: 32, 512>}, {transform_indices = @transform_2, window_bounds = array<i64: 1, 1>}, {transform_indices = @transform_3, window_bounds = array<i64: 1, 1>}]} {
    %c0_i32 = arith.constant 0 : i32
    %0 = arith.cmpi eq, %arg1, %c0_i32 : i32
    %1 = arith.extui %0 : i1 to i32
    %c0_i32_0 = arith.constant 0 : i32
    %2 = arith.cmpi ne, %1, %c0_i32_0 : i32
    scf.if %2 {
      %cst = arith.constant 0.000000e+00 : f32
      %18 = vector.broadcast %cst : f32 to vector<8x512xf32>
      %c0 = arith.constant 0 : index
      %c0_8 = arith.constant 0 : index
      %19 = vector.load %arg6[%c0, %c0_8] : memref<8x512xf32, #tpu.memory_space<vmem>>, vector<8x512xf32>
      tpu.vector_store %arg6[%c0, %c0_8], %18 {strides = array<i32>} : memref<8x512xf32, #tpu.memory_space<vmem>>, vector<8x512xf32>,
      %cst_9 = arith.constant 0.000000e+00 : f32
      %20 = vector.broadcast %cst_9 : f32 to vector<8x512xf32>
      %c0_10 = arith.constant 0 : index
      %c0_11 = arith.constant 0 : index
      %21 = vector.load %arg7[%c0_10, %c0_11] : memref<8x512xf32, #tpu.memory_space<vmem>>, vector<8x512xf32>
      tpu.vector_store %arg7[%c0_10, %c0_11], %20 {strides = array<i32>} : memref<8x512xf32, #tpu.memory_space<vmem>>, vector<8x512xf32>,
    } else {
    }
    %c1_i32 = arith.constant 1 : i32
    %3 = arith.muli %arg0, %c1_i32 : i32
    %4 = arith.addi %3, %arg1 : i32
    %c32_i32 = arith.constant 32 : i32
    %5 = arith.muli %4, %c32_i32 : i32
    %c4_i32 = arith.constant 4 : i32
    %6 = arith.subi %c4_i32, %5 : i32
    %c32_i32_1 = arith.constant 32 : i32
    %7 = arith.cmpi sge, %6, %c32_i32_1 : i32
    %8 = arith.extui %7 : i1 to i32
    %c0_i32_2 = arith.constant 0 : i32
    %9 = arith.cmpi ne, %8, %c0_i32_2 : i32
    scf.if %9 {
      %c0 = arith.constant 0 : index
      %c0_8 = arith.constant 0 : index
      %18 = vector.load %arg2[%c0, %c0_8] : memref<32x512xf32, #tpu.memory_space<vmem>>, vector<32x512xf32>
      %c0_9 = arith.constant 0 : index
      %c0_10 = arith.constant 0 : index
      %19 = vector.load %arg3[%c0_9, %c0_10] : memref<32x512xf32, #tpu.memory_space<vmem>>, vector<32x512xf32>
      %cst = arith.constant 1.000000e+00 : f32
      %20 = vector.broadcast %cst : f32 to vector<32x512xf32>
      %21 = arith.cmpf oeq, %19, %20 : vector<32x512xf32>
      %cst_11 = arith.constant 1.000000e+00 : f32
      %22 = vector.broadcast %cst_11 : f32 to vector<32x512xf32>
      %23 = arith.subf %22, %18 : vector<32x512xf32>
      %cst_12 = arith.constant 1.000000e+00 : f32
      %24 = vector.broadcast %cst_12 : f32 to vector<32x512xf32>
      %25 = arith.subf %24, %19 : vector<32x512xf32>
      %cst_13 = arith.constant 0.000000e+00 : f32
      %26 = vector.broadcast %cst_13 : f32 to vector<32x512xf32>
      %27 = arith.maximumf %25, %26 : vector<32x512xf32>
      %28 = arith.mulf %27, %27 : vector<32x512xf32>
      %29 = arith.mulf %18, %28 : vector<32x512xf32>
      %30 = arith.select %21, %23, %29 : vector<32x512xi1>, vector<32x512xf32>
      %31 = arith.select %21, %18, %23 : vector<32x512xi1>, vector<32x512xf32>
      %32 = math.log %31 : vector<32x512xf32>
      %33 = arith.mulf %30, %30 : vector<32x512xf32>
      %34 = arith.mulf %32, %33 : vector<32x512xf32>
      %c0_14 = arith.constant 0 : index
      %c0_15 = arith.constant 0 : index
      %35 = vector.load %arg6[%c0_14, %c0_15] : memref<8x512xf32, #tpu.memory_space<vmem>>, vector<8x512xf32>
      %36 = vector.shape_cast %34 : vector<32x512xf32> to vector<4x8x512xf32>
      %cst_16 = arith.constant dense<0.000000e+00> : vector<8x512xf32>
      %37 = vector.multi_reduction <add>, %36, %cst_16 [0] : vector<4x8x512xf32> to vector<8x512xf32>
      %38 = arith.addf %35, %37 : vector<8x512xf32>
      %c0_17 = arith.constant 0 : index
      %c0_18 = arith.constant 0 : index
      %39 = vector.load %arg6[%c0_17, %c0_18] : memref<8x512xf32, #tpu.memory_space<vmem>>, vector<8x512xf32>
      tpu.vector_store %arg6[%c0_17, %c0_18], %38 {strides = array<i32>} : memref<8x512xf32, #tpu.memory_space<vmem>>, vector<8x512xf32>,
      %c0_19 = arith.constant 0 : index
      %c0_20 = arith.constant 0 : index
      %40 = vector.load %arg7[%c0_19, %c0_20] : memref<8x512xf32, #tpu.memory_space<vmem>>, vector<8x512xf32>
      %41 = arith.extui %21 : vector<32x512xi1> to vector<32x512xi32>
      %42 = arith.sitofp %41 : vector<32x512xi32> to vector<32x512xf32>
      %43 = vector.shape_cast %42 : vector<32x512xf32> to vector<4x8x512xf32>
      %cst_21 = arith.constant dense<0.000000e+00> : vector<8x512xf32>
      %44 = vector.multi_reduction <add>, %43, %cst_21 [0] : vector<4x8x512xf32> to vector<8x512xf32>
      %45 = arith.addf %40, %44 : vector<8x512xf32>
      %c0_22 = arith.constant 0 : index
      %c0_23 = arith.constant 0 : index
      %46 = vector.load %arg7[%c0_22, %c0_23] : memref<8x512xf32, #tpu.memory_space<vmem>>, vector<8x512xf32>
      tpu.vector_store %arg7[%c0_22, %c0_23], %45 {strides = array<i32>} : memref<8x512xf32, #tpu.memory_space<vmem>>, vector<8x512xf32>,
    } else {
    }
    %c0_i32_3 = arith.constant 0 : i32
    %10 = arith.cmpi sgt, %6, %c0_i32_3 : i32
    %c32_i32_4 = arith.constant 32 : i32
    %11 = arith.cmpi slt, %6, %c32_i32_4 : i32
    %12 = arith.andi %10, %11 : i1
    %13 = arith.extui %12 : i1 to i32
    %c0_i32_5 = arith.constant 0 : i32
    %14 = arith.cmpi ne, %13, %c0_i32_5 : i32
    scf.if %14 {
      %18 = tpu.iota {dimensions = array<i32: 0>} : vector<32x512xi32>
      %19 = vector.broadcast %6 : i32 to vector<32x512xi32>
      %20 = arith.cmpi slt, %18, %19 : vector<32x512xi32>
      %c0 = arith.constant 0 : index
      %c0_8 = arith.constant 0 : index
      %21 = vector.load %arg2[%c0, %c0_8] : memref<32x512xf32, #tpu.memory_space<vmem>>, vector<32x512xf32>
      %cst = arith.constant 0.000000e+00 : f32
      %22 = vector.broadcast %cst : f32 to vector<32x512xf32>
      %23 = arith.select %20, %21, %22 : vector<32x512xi1>, vector<32x512xf32>
      %c0_9 = arith.constant 0 : index
      %c0_10 = arith.constant 0 : index
      %24 = vector.load %arg3[%c0_9, %c0_10] : memref<32x512xf32, #tpu.memory_space<vmem>>, vector<32x512xf32>
      %cst_11 = arith.constant 0.000000e+00 : f32
      %25 = vector.broadcast %cst_11 : f32 to vector<32x512xf32>
      %26 = arith.select %20, %24, %25 : vector<32x512xi1>, vector<32x512xf32>
      %cst_12 = arith.constant 1.000000e+00 : f32
      %27 = vector.broadcast %cst_12 : f32 to vector<32x512xf32>
      %28 = arith.cmpf oeq, %26, %27 : vector<32x512xf32>
      %cst_13 = arith.constant 1.000000e+00 : f32
      %29 = vector.broadcast %cst_13 : f32 to vector<32x512xf32>
      %30 = arith.subf %29, %23 : vector<32x512xf32>
      %cst_14 = arith.constant 1.000000e+00 : f32
      %31 = vector.broadcast %cst_14 : f32 to vector<32x512xf32>
      %32 = arith.subf %31, %26 : vector<32x512xf32>
      %cst_15 = arith.constant 0.000000e+00 : f32
      %33 = vector.broadcast %cst_15 : f32 to vector<32x512xf32>
      %34 = arith.maximumf %32, %33 : vector<32x512xf32>
      %35 = arith.mulf %34, %34 : vector<32x512xf32>
      %36 = arith.mulf %23, %35 : vector<32x512xf32>
      %37 = arith.select %28, %30, %36 : vector<32x512xi1>, vector<32x512xf32>
      %38 = arith.select %28, %23, %30 : vector<32x512xi1>, vector<32x512xf32>
      %39 = math.log %38 : vector<32x512xf32>
      %40 = arith.mulf %37, %37 : vector<32x512xf32>
      %41 = arith.mulf %39, %40 : vector<32x512xf32>
      %c0_16 = arith.constant 0 : index
      %c0_17 = arith.constant 0 : index
      %42 = vector.load %arg6[%c0_16, %c0_17] : memref<8x512xf32, #tpu.memory_space<vmem>>, vector<8x512xf32>
      %43 = vector.shape_cast %41 : vector<32x512xf32> to vector<4x8x512xf32>
      %cst_18 = arith.constant dense<0.000000e+00> : vector<8x512xf32>
      %44 = vector.multi_reduction <add>, %43, %cst_18 [0] : vector<4x8x512xf32> to vector<8x512xf32>
      %45 = arith.addf %42, %44 : vector<8x512xf32>
      %c0_19 = arith.constant 0 : index
      %c0_20 = arith.constant 0 : index
      %46 = vector.load %arg6[%c0_19, %c0_20] : memref<8x512xf32, #tpu.memory_space<vmem>>, vector<8x512xf32>
      tpu.vector_store %arg6[%c0_19, %c0_20], %45 {strides = array<i32>} : memref<8x512xf32, #tpu.memory_space<vmem>>, vector<8x512xf32>,
      %c0_21 = arith.constant 0 : index
      %c0_22 = arith.constant 0 : index
      %47 = vector.load %arg7[%c0_21, %c0_22] : memref<8x512xf32, #tpu.memory_space<vmem>>, vector<8x512xf32>
      %48 = arith.extui %28 : vector<32x512xi1> to vector<32x512xi32>
      %49 = arith.sitofp %48 : vector<32x512xi32> to vector<32x512xf32>
      %50 = vector.shape_cast %49 : vector<32x512xf32> to vector<4x8x512xf32>
      %cst_23 = arith.constant dense<0.000000e+00> : vector<8x512xf32>
      %51 = vector.multi_reduction <add>, %50, %cst_23 [0] : vector<4x8x512xf32> to vector<8x512xf32>
      %52 = arith.addf %47, %51 : vector<8x512xf32>
      %c0_24 = arith.constant 0 : index
      %c0_25 = arith.constant 0 : index
      %53 = vector.load %arg7[%c0_24, %c0_25] : memref<8x512xf32, #tpu.memory_space<vmem>>, vector<8x512xf32>
      tpu.vector_store %arg7[%c0_24, %c0_25], %52 {strides = array<i32>} : memref<8x512xf32, #tpu.memory_space<vmem>>, vector<8x512xf32>,
    } else {
    }
    %c0_i32_6 = arith.constant 0 : i32
    %15 = arith.cmpi eq, %arg1, %c0_i32_6 : i32
    %16 = arith.extui %15 : i1 to i32
    %c0_i32_7 = arith.constant 0 : i32
    %17 = arith.cmpi ne, %16, %c0_i32_7 : i32
    scf.if %17 {
      %c0 = arith.constant 0 : index
      %c0_8 = arith.constant 0 : index
      %18 = vector.load %arg6[%c0, %c0_8] : memref<8x512xf32, #tpu.memory_space<vmem>>, vector<8x512xf32>
      %19 = vector.shape_cast %18 : vector<8x512xf32> to vector<1x8x512xf32>
      %cst = arith.constant dense<0.000000e+00> : vector<1xf32>
      %20 = vector.multi_reduction <add>, %19, %cst [1, 2] : vector<1x8x512xf32> to vector<1xf32>
      %21 = vector.shape_cast %20 : vector<1xf32> to vector<1x1x1xf32>
      %22 = vector.extract %21[0, 0, 0] : f32 from vector<1x1x1xf32>
      %c0_9 = arith.constant 0 : index
      %c0_10 = arith.constant 0 : index
      %23 = memref.load %arg4[%c0_9, %c0_10] : memref<1x1xf32, #tpu.memory_space<smem>>
      memref.store %22, %arg4[%c0_9, %c0_10] : memref<1x1xf32, #tpu.memory_space<smem>>
      %c0_11 = arith.constant 0 : index
      %c0_12 = arith.constant 0 : index
      %24 = vector.load %arg7[%c0_11, %c0_12] : memref<8x512xf32, #tpu.memory_space<vmem>>, vector<8x512xf32>
      %25 = vector.shape_cast %24 : vector<8x512xf32> to vector<1x8x512xf32>
      %cst_13 = arith.constant dense<0.000000e+00> : vector<1xf32>
      %26 = vector.multi_reduction <add>, %25, %cst_13 [1, 2] : vector<1x8x512xf32> to vector<1xf32>
      %27 = vector.shape_cast %26 : vector<1xf32> to vector<1x1x1xf32>
      %28 = vector.extract %27[0, 0, 0] : f32 from vector<1x1x1xf32>
      %c0_14 = arith.constant 0 : index
      %c0_15 = arith.constant 0 : index
      %29 = memref.load %arg5[%c0_14, %c0_15] : memref<1x1xf32, #tpu.memory_space<smem>>
      memref.store %28, %arg5[%c0_14, %c0_15] : memref<1x1xf32, #tpu.memory_space<smem>>
    } else {
    }
    return
  }
  func.func @transform_0(%arg0: i32, %arg1: i32) -> (i32, i32) {
    %c1_i32 = arith.constant 1 : i32
    %0 = arith.muli %arg0, %c1_i32 : i32
    %1 = arith.addi %0, %arg1 : i32
    %c0_i32 = arith.constant 0 : i32
    %c0_i32_0 = arith.constant 0 : i32
    return %1, %c0_i32 : i32, i32
  }
  func.func @transform_1(%arg0: i32, %arg1: i32) -> (i32, i32) {
    %c1_i32 = arith.constant 1 : i32
    %0 = arith.muli %arg0, %c1_i32 : i32
    %1 = arith.addi %0, %arg1 : i32
    %c0_i32 = arith.constant 0 : i32
    %c0_i32_0 = arith.constant 0 : i32
    return %1, %c0_i32 : i32, i32
  }
  func.func @transform_2(%arg0: i32, %arg1: i32) -> (i32, i32) {
    %c0_i32 = arith.constant 0 : i32
    %c0_i32_0 = arith.constant 0 : i32
    return %arg0, %c0_i32 : i32, i32
  }
  func.func @transform_3(%arg0: i32, %arg1: i32) -> (i32, i32) {
    %c0_i32 = arith.constant 0 : i32
    %c0_i32_0 = arith.constant 0 : i32
    return %arg0, %c0_i32 : i32, i32
  }
}

</mosaic_0001>

<llo_original>
// kernel: tpu_custom_call.1
$region0: #{tpu_custom_call.1}
  #allocation0 [shape = 'u32[]', space=smem, size = 0x4, offset = 0x4, fixed_abs, tag = 'smem constant byte address 0x4 - core index']
  #allocation1 [shape = 'u32[72,128]{1,0:T(1,128)}', space=vmem, size = 0x9000, scoped, tag = 'internal scratch']
  #allocation2 [shape = 'f32[8,512]{1,0:T(8,128)}', space=vmem, size = 0x4000, scoped, tag = 'scratch operand']
  #allocation3 [shape = 'f32[8,512]{1,0:T(8,128)}', space=vmem, size = 0x4000, scoped, tag = 'scratch operand']
  %s0 = inlined_call_operand.hbm [shape: f32[4,512], index: 0, kind: input, shape index: {}]
  %s1 = inlined_call_operand.hbm [shape: f32[4,512], index: 1, kind: input, shape index: {}]
  %s2 = inlined_call_operand.hbm [shape: f32[1,1], index: 2, kind: output, shape index: {0}]
  %s3 = inlined_call_operand.hbm [shape: f32[1,1], index: 3, kind: output, shape index: {1}]
  %4 = xla_tuple %s2, %s3
  %s5 = sld [smem:[#allocation0]]
  $region50: #{tpu_custom_call.1} parent=0
    _
  %s7 = ssub.s32 1, %s5
  %s8 = scalar_select 0, %s7, %s5
  $region1: #{tpu_custom_call.1} parent=0
    #allocation4 [shape = 'u8[65536]{0}', space=vmem, size = 0x10000, scoped, tag = 'input window, operand 0, single buffered']
    #allocation5 [shape = 's32[1]{0}', space=sflag, size = 0x4, scoped, tag = 'scoped memory for tpu_custom_call.1']
    #allocation6 [shape = 's32[1]{0}', space=sflag, size = 0x4, scoped, tag = 'scoped memory for tpu_custom_call.1']
    #allocation7 [shape = 'u8[65536]{0}', space=vmem, size = 0x10000, scoped, tag = 'input window, operand 1, single buffered']
    #allocation8 [shape = 's32[1]{0}', space=sflag, size = 0x4, scoped, tag = 'scoped memory for tpu_custom_call.1']
    #allocation9 [shape = 'u8[512]{0}', space=smem, size = 0x200, scoped, tag = 'output window, operand 0, single buffered']
    #allocation10 [shape = 'u8[512]{0}', space=smem, size = 0x200, scoped, tag = 'output window, operand 1, single buffered']
    #allocation11 [shape = 's32[1]{0}', space=sflag, size = 0x4, scoped, tag = 'scoped memory for tpu_custom_call.1']
    %9 = vsyncpa [#allocation5], 0
    %10 = vsyncpa [#allocation8], 0
    %11 = vsyncpa [#allocation6], 0
    %12 = vsyncpa [#allocation11], 0
    // Predicated region
    $region2: #{tpu_custom_call.1} parent=1 // pred_check
      _
    $region3: #{tpu_custom_call.1} parent=1 // pred_check_branch
      %14 = sbr.rel (0) target = $region5
    $region4: #{tpu_custom_call.1} parent=1 // pred_region
      %s15 = sadd.s32 0, 0
      %s16 = smul.u32 8, %s15
      %s17 = ssub.s32 1, %s16
      %s18 = smul.u32 4, %s17
      %s19 = smul.u32 %s18, 4
      %s20 = ssub.s32 128, %s19
      %s21 = sshll.u32 %s20, 4
      %22 = vsyncadd [#allocation5], %s21
      %p23 = scmp.ne.s32.totalorder 0, %s19
      %s24 = smul.addr %s16, 4
      %s25 = smul.addr %s24, 4
      %s26 = scalar_lea.hbm %s0, %s25
      %s27 = smul.u32 16, %s17
      %s28 = sshll.u32 %s26, 4
      %s29 = int_to_ptr.hbm [resolvable:$true] %s28
      %s30 = sshll.u32 [#allocation4], 4
      %s31 = int_to_ptr.vmem [resolvable:$true] %s30
      %s32 = sshll.u32 %s27, 4
      %36 = dma.hbm_to_vmem [thread:$0]  (%p23), %s29, %s32, %s31, [#allocation5], 256, 256, 16
    $region5: #{tpu_custom_call.1} parent=1 // pred_fallthru
      _
    // Predicated region
    $region6: #{tpu_custom_call.1} parent=1 // pred_check
      _
    $region7: #{tpu_custom_call.1} parent=1 // pred_check_branch
      %38 = sbr.rel (0) target = $region9
    $region8: #{tpu_custom_call.1} parent=1 // pred_region
      %s39 = sadd.s32 0, 0
      %s40 = smul.u32 8, %s39
      %s41 = ssub.s32 1, %s40
      %s42 = smul.u32 4, %s41
      %s43 = smul.u32 %s42, 4
      %s44 = ssub.s32 128, %s43
      %s45 = sshll.u32 %s44, 4
      %46 = vsyncadd [#allocation8], %s45
      %p47 = scmp.ne.s32.totalorder 0, %s43
      %s48 = smul.addr %s40, 4
      %s49 = smul.addr %s48, 4
      %s50 = scalar_lea.hbm %s1, %s49
      %s51 = smul.u32 16, %s41
      %s52 = sshll.u32 %s50, 4
      %s53 = int_to_ptr.hbm [resolvable:$true] %s52
      %s54 = sshll.u32 [#allocation7], 4
      %s55 = int_to_ptr.vmem [resolvable:$true] %s54
      %s56 = sshll.u32 %s51, 4
      %60 = dma.hbm_to_vmem [thread:$0]  (%p47), %s53, %s56, %s55, [#allocation8], 256, 256, 16
    $region9: #{tpu_custom_call.1} parent=1 // pred_fallthru
      _
    // Predicated region
    $region10: #{tpu_custom_call.1} parent=1 // pred_check
      _
    $region11: #{tpu_custom_call.1} parent=1 // pred_check_branch
      %62 = sbr.rel (0) target = $region13
    $region12: #{tpu_custom_call.1} parent=1 // pred_region
      %64 = dma.done [#allocation5], 2048
    $region13: #{tpu_custom_call.1} parent=1 // pred_fallthru
      _
    // Predicated region
    $region14: #{tpu_custom_call.1} parent=1 // pred_check
      _
    $region15: #{tpu_custom_call.1} parent=1 // pred_check_branch
      %66 = sbr.rel (0) target = $region17
    $region16: #{tpu_custom_call.1} parent=1 // pred_region
      %68 = dma.done [#allocation8], 2048
    $region17: #{tpu_custom_call.1} parent=1 // pred_fallthru
      _
    %s69 = sadd.s32 0, 0
    %s70 = smul.u32 8, %s69
    %s71 = ssub.s32 1, %s70
    %s72 = smul.u32 4, %s71
    %s73 = smul.u32 %s72, 4
    %s74 = sadd.s32 0, 0
    %s75 = smul.u32 8, %s74
    %s76 = ssub.s32 1, %s75
    %s77 = smul.u32 4, %s76
    %s78 = smul.u32 %s77, 4
    %p79 = scmp.eq.s32.totalorder 0, 0
    // Predicated region
    $region18: #{tpu_custom_call.1} parent=1 // pred_check
      %p80 = pneg %p79
    $region19: #{tpu_custom_call.1} parent=1 // pred_check_branch
      %82 = sbr.rel (%p80) target = $region21
    $region20: #{tpu_custom_call.1} parent=1 // pred_region
      %83 = vst [vmem:[#allocation2] sm:$0xff] 0.0
      %84 = vst [vmem:[#allocation2 + $0x8] sm:$0xff] 0.0
      %85 = vst [vmem:[#allocation2 + $0x10] sm:$0xff] 0.0
      %86 = vst [vmem:[#allocation2 + $0x18] sm:$0xff] 0.0
      %87 = vst [vmem:[#allocation3] sm:$0xff] 0.0
      %88 = vst [vmem:[#allocation3 + $0x8] sm:$0xff] 0.0
      %89 = vst [vmem:[#allocation3 + $0x10] sm:$0xff] 0.0
      %90 = vst [vmem:[#allocation3 + $0x18] sm:$0xff] 0.0
    $region21: #{tpu_custom_call.1} parent=1 // pred_fallthru
      _
    %s91 = sadd.s32 0, 0
    %s92 = smul.u32 %s91, 32
    %s93 = ssub.s32 4, %s92
    %p94 = scmp.ge.s32.totalorder %s93, 32
    // Predicated region
    $region22: #{tpu_custom_call.1} parent=1 // pred_check
      %p95 = pneg %p94
    $region23: #{tpu_custom_call.1} parent=1 // pred_check_branch
      %97 = sbr.rel (%p95) target = $region25
    $region24: #{tpu_custom_call.1} parent=1 // pred_region
      %v98 = vld [vmem:[#allocation4] sm:$0xff]
      %v99 = vld [vmem:[#allocation4 + $0x8] sm:$0xff]
      %v100 = vld [vmem:[#allocation4 + $0x10] sm:$0xff]
      %v101 = vld [vmem:[#allocation4 + $0x18] sm:$0xff]
      %v102 = vld [vmem:[#allocation4 + $0x20] sm:$0xff]
      %v103 = vld [vmem:[#allocation4 + $0x28] sm:$0xff]
      %v104 = vld [vmem:[#allocation4 + $0x30] sm:$0xff]
      %v105 = vld [vmem:[#allocation4 + $0x38] sm:$0xff]
      %v106 = vld [vmem:[#allocation4 + $0x40] sm:$0xff]
      %v107 = vld [vmem:[#allocation4 + $0x48] sm:$0xff]
      %v108 = vld [vmem:[#allocation4 + $0x50] sm:$0xff]
      %v109 = vld [vmem:[#allocation4 + $0x58] sm:$0xff]
      %v110 = vld [vmem:[#allocation4 + $0x60] sm:$0xff]
      %v111 = vld [vmem:[#allocation4 + $0x68] sm:$0xff]
      %v112 = vld [vmem:[#allocation4 + $0x70] sm:$0xff]
      %v113 = vld [vmem:[#allocation4 + $0x78] sm:$0xff]
      %v114 = vld [vmem:[#allocation7] sm:$0xff]
      %v115 = vld [vmem:[#allocation7 + $0x8] sm:$0xff]
      %v116 = vld [vmem:[#allocation7 + $0x10] sm:$0xff]
      %v117 = vld [vmem:[#allocation7 + $0x18] sm:$0xff]
      %v118 = vld [vmem:[#allocation7 + $0x20] sm:$0xff]
      %v119 = vld [vmem:[#allocation7 + $0x28] sm:$0xff]
      %v120 = vld [vmem:[#allocation7 + $0x30] sm:$0xff]
      %v121 = vld [vmem:[#allocation7 + $0x38] sm:$0xff]
      %v122 = vld [vmem:[#allocation7 + $0x40] sm:$0xff]
      %v123 = vld [vmem:[#allocation7 + $0x48] sm:$0xff]
      %v124 = vld [vmem:[#allocation7 + $0x50] sm:$0xff]
      %v125 = vld [vmem:[#allocation7 + $0x58] sm:$0xff]
      %v126 = vld [vmem:[#allocation7 + $0x60] sm:$0xff]
      %v127 = vld [vmem:[#allocation7 + $0x68] sm:$0xff]
      %v128 = vld [vmem:[#allocation7 + $0x70] sm:$0xff]
      %v129 = vld [vmem:[#allocation7 + $0x78] sm:$0xff]
      %vm130 = vcmp.eq.f32.partialorder %v114, 1.0
      %vm131 = vcmp.eq.f32.partialorder %v115, 1.0
      %vm132 = vcmp.eq.f32.partialorder %v116, 1.0
      %vm133 = vcmp.eq.f32.partialorder %v117, 1.0
      %vm134 = vcmp.eq.f32.partialorder %v118, 1.0
      %vm135 = vcmp.eq.f32.partialorder %v119, 1.0
      %vm136 = vcmp.eq.f32.partialorder %v120, 1.0
      %vm137 = vcmp.eq.f32.partialorder %v121, 1.0
      %vm138 = vcmp.eq.f32.partialorder %v122, 1.0
      %vm139 = vcmp.eq.f32.partialorder %v123, 1.0
      %vm140 = vcmp.eq.f32.partialorder %v124, 1.0
      %vm141 = vcmp.eq.f32.partialorder %v125, 1.0
      %vm142 = vcmp.eq.f32.partialorder %v126, 1.0
      %vm143 = vcmp.eq.f32.partialorder %v127, 1.0
      %vm144 = vcmp.eq.f32.partialorder %v128, 1.0
      %vm145 = vcmp.eq.f32.partialorder %v129, 1.0
      %v146 = vsub.f32 1.0, %v98
      %v147 = vsub.f32 1.0, %v99
      %v148 = vsub.f32 1.0, %v100
      %v149 = vsub.f32 1.0, %v101
      %v150 = vsub.f32 1.0, %v102
      %v151 = vsub.f32 1.0, %v103
      %v152 = vsub.f32 1.0, %v104
      %v153 = vsub.f32 1.0, %v105
      %v154 = vsub.f32 1.0, %v106
      %v155 = vsub.f32 1.0, %v107
      %v156 = vsub.f32 1.0, %v108
      %v157 = vsub.f32 1.0, %v109
      %v158 = vsub.f32 1.0, %v110
      %v159 = vsub.f32 1.0, %v111
      %v160 = vsub.f32 1.0, %v112
      %v161 = vsub.f32 1.0, %v113
      %v162 = vsub.f32 1.0, %v114
      %v163 = vsub.f32 1.0, %v115
      %v164 = vsub.f32 1.0, %v116
      %v165 = vsub.f32 1.0, %v117
      %v166 = vsub.f32 1.0, %v118
      %v167 = vsub.f32 1.0, %v119
      %v168 = vsub.f32 1.0, %v120
      %v169 = vsub.f32 1.0, %v121
      %v170 = vsub.f32 1.0, %v122
      %v171 = vsub.f32 1.0, %v123
      %v172 = vsub.f32 1.0, %v124
      %v173 = vsub.f32 1.0, %v125
      %v174 = vsub.f32 1.0, %v126
      %v175 = vsub.f32 1.0, %v127
      %v176 = vsub.f32 1.0, %v128
      %v177 = vsub.f32 1.0, %v129
      %v178 = vmax.f32 %v162, 0.0
      %v179 = vmax.f32 %v163, 0.0
      %v180 = vmax.f32 %v164, 0.0
      %v181 = vmax.f32 %v165, 0.0
      %v182 = vmax.f32 %v166, 0.0
      %v183 = vmax.f32 %v167, 0.0
      %v184 = vmax.f32 %v168, 0.0
      %v185 = vmax.f32 %v169, 0.0
      %v186 = vmax.f32 %v170, 0.0
      %v187 = vmax.f32 %v171, 0.0
      %v188 = vmax.f32 %v172, 0.0
      %v189 = vmax.f32 %v173, 0.0
      %v190 = vmax.f32 %v174, 0.0
      %v191 = vmax.f32 %v175, 0.0
      %v192 = vmax.f32 %v176, 0.0
      %v193 = vmax.f32 %v177, 0.0
      %v194 = vmul.f32 %v178, %v178
      %v195 = vmul.f32 %v179, %v179
      %v196 = vmul.f32 %v180, %v180
      %v197 = vmul.f32 %v181, %v181
      %v198 = vmul.f32 %v182, %v182
      %v199 = vmul.f32 %v183, %v183
      %v200 = vmul.f32 %v184, %v184
      %v201 = vmul.f32 %v185, %v185
      %v202 = vmul.f32 %v186, %v186
      %v203 = vmul.f32 %v187, %v187
      %v204 = vmul.f32 %v188, %v188
      %v205 = vmul.f32 %v189, %v189
      %v206 = vmul.f32 %v190, %v190
      %v207 = vmul.f32 %v191, %v191
      %v208 = vmul.f32 %v192, %v192
      %v209 = vmul.f32 %v193, %v193
      %v210 = vmul.f32 %v98, %v194
      %v211 = vmul.f32 %v99, %v195
      %v212 = vmul.f32 %v100, %v196
      %v213 = vmul.f32 %v101, %v197
      %v214 = vmul.f32 %v102, %v198
      %v215 = vmul.f32 %v103, %v199
      %v216 = vmul.f32 %v104, %v200
      %v217 = vmul.f32 %v105, %v201
      %v218 = vmul.f32 %v106, %v202
      %v219 = vmul.f32 %v107, %v203
      %v220 = vmul.f32 %v108, %v204
      %v221 = vmul.f32 %v109, %v205
      %v222 = vmul.f32 %v110, %v206
      %v223 = vmul.f32 %v111, %v207
      %v224 = vmul.f32 %v112, %v208
      %v225 = vmul.f32 %v113, %v209
      %v226 = vsel %vm130, %v146, %v210
      %v227 = vsel %vm131, %v147, %v211
      %v228 = vsel %vm132, %v148, %v212
      %v229 = vsel %vm133, %v149, %v213
      %v230 = vsel %vm134, %v150, %v214
      %v231 = vsel %vm135, %v151, %v215
      %v232 = vsel %vm136, %v152, %v216
      %v233 = vsel %vm137, %v153, %v217
      %v234 = vsel %vm138, %v154, %v218
      %v235 = vsel %vm139, %v155, %v219
      %v236 = vsel %vm140, %v156, %v220
      %v237 = vsel %vm141, %v157, %v221
      %v238 = vsel %vm142, %v158, %v222
      %v239 = vsel %vm143, %v159, %v223
      %v240 = vsel %vm144, %v160, %v224
      %v241 = vsel %vm145, %v161, %v225
      %v242 = vsel %vm130, %v98, %v146
      %v243 = vsel %vm131, %v99, %v147
      %v244 = vsel %vm132, %v100, %v148
      %v245 = vsel %vm133, %v101, %v149
      %v246 = vsel %vm134, %v102, %v150
      %v247 = vsel %vm135, %v103, %v151
      %v248 = vsel %vm136, %v104, %v152
      %v249 = vsel %vm137, %v105, %v153
      %v250 = vsel %vm138, %v106, %v154
      %v251 = vsel %vm139, %v107, %v155
      %v252 = vsel %vm140, %v108, %v156
      %v253 = vsel %vm141, %v109, %v157
      %v254 = vsel %vm142, %v110, %v158
      %v255 = vsel %vm143, %v111, %v159
      %v256 = vsel %vm144, %v112, %v160
      %v257 = vsel %vm145, %v113, %v161
      %v258 = vlog2.pop %v242
      %v259 = vmul.f32 %v258, 0.6931472
      %v260 = vlog2.pop %v243
      %v261 = vmul.f32 %v260, 0.6931472
      %v262 = vlog2.pop %v244
      %v263 = vmul.f32 %v262, 0.6931472
      %v264 = vlog2.pop %v245
      %v265 = vmul.f32 %v264, 0.6931472
      %v266 = vlog2.pop %v246
      %v267 = vmul.f32 %v266, 0.6931472
      %v268 = vlog2.pop %v247
      %v269 = vmul.f32 %v268, 0.6931472
      %v270 = vlog2.pop %v248
      %v271 = vmul.f32 %v270, 0.6931472
      %v272 = vlog2.pop %v249
      %v273 = vmul.f32 %v272, 0.6931472
      %v274 = vlog2.pop %v250
      %v275 = vmul.f32 %v274, 0.6931472
      %v276 = vlog2.pop %v251
      %v277 = vmul.f32 %v276, 0.6931472
      %v278 = vlog2.pop %v252
      %v279 = vmul.f32 %v278, 0.6931472
      %v280 = vlog2.pop %v253
      %v281 = vmul.f32 %v280, 0.6931472
      %v282 = vlog2.pop %v254
      %v283 = vmul.f32 %v282, 0.6931472
      %v284 = vlog2.pop %v255
      %v285 = vmul.f32 %v284, 0.6931472
      %v286 = vlog2.pop %v256
      %v287 = vmul.f32 %v286, 0.6931472
      %v288 = vlog2.pop %v257
      %v289 = vmul.f32 %v288, 0.6931472
      %v290 = vmul.f32 %v226, %v226
      %v291 = vmul.f32 %v227, %v227
      %v292 = vmul.f32 %v228, %v228
      %v293 = vmul.f32 %v229, %v229
      %v294 = vmul.f32 %v230, %v230
      %v295 = vmul.f32 %v231, %v231
      %v296 = vmul.f32 %v232, %v232
      %v297 = vmul.f32 %v233, %v233
      %v298 = vmul.f32 %v234, %v234
      %v299 = vmul.f32 %v235, %v235
      %v300 = vmul.f32 %v236, %v236
      %v301 = vmul.f32 %v237, %v237
      %v302 = vmul.f32 %v238, %v238
      %v303 = vmul.f32 %v239, %v239
      %v304 = vmul.f32 %v240, %v240
      %v305 = vmul.f32 %v241, %v241
      %v306 = vmul.f32 %v259, %v290
      %v307 = vmul.f32 %v261, %v291
      %v308 = vmul.f32 %v263, %v292
      %v309 = vmul.f32 %v265, %v293
      %v310 = vmul.f32 %v267, %v294
      %v311 = vmul.f32 %v269, %v295
      %v312 = vmul.f32 %v271, %v296
      %v313 = vmul.f32 %v273, %v297
      %v314 = vmul.f32 %v275, %v298
      %v315 = vmul.f32 %v277, %v299
      %v316 = vmul.f32 %v279, %v300
      %v317 = vmul.f32 %v281, %v301
      %v318 = vmul.f32 %v283, %v302
      %v319 = vmul.f32 %v285, %v303
      %v320 = vmul.f32 %v287, %v304
      %v321 = vmul.f32 %v289, %v305
      %v322 = vld [vmem:[#allocation2] sm:$0xff]
      %v323 = vld [vmem:[#allocation2 + $0x8] sm:$0xff]
      %v324 = vld [vmem:[#allocation2 + $0x10] sm:$0xff]
      %v325 = vld [vmem:[#allocation2 + $0x18] sm:$0xff]
      %342 = vst [vmem:[#allocation1] ss:$2 sm:$0xff] %v306
      %s343 = scalar_lea.vmem [#allocation1], 1
      %344 = vst [vmem:[%s343] ss:$2 sm:$0xff] %v308
      %s345 = scalar_lea.vmem [#allocation1], 16
      %346 = vst [vmem:[%s345] ss:$2 sm:$0xff] %v307
      %s347 = scalar_lea.vmem [#allocation1], 17
      %348 = vst [vmem:[%s347] ss:$2 sm:$0xff] %v309
      %v349 = vld.sshfl [vmem:[#allocation1] sm:$0xff pattern:$0x75316420]
      %v350 = vld.sshfl [vmem:[#allocation1 + $0x8] sm:$0xff pattern:$0x75316420]
      %v351 = vld.sshfl [vmem:[#allocation1 + $0x10] sm:$0xff pattern:$0x75316420]
      %v352 = vld.sshfl [vmem:[#allocation1 + $0x18] sm:$0xff pattern:$0x75316420]
      %s353 = scalar_lea.vmem [#allocation1], 32
      %354 = vst [vmem:[%s353] ss:$2 sm:$0xff] %v310
      %s355 = scalar_lea.vmem [#allocation1], 33
      %356 = vst [vmem:[%s355] ss:$2 sm:$0xff] %v312
      %s357 = scalar_lea.vmem [#allocation1], 48
      %358 = vst [vmem:[%s357] ss:$2 sm:$0xff] %v311
      %s359 = scalar_lea.vmem [#allocation1], 49
      %360 = vst [vmem:[%s359] ss:$2 sm:$0xff] %v313
      %v361 = vld.sshfl [vmem:[#allocation1 + $0x20] sm:$0xff pattern:$0x75316420]
      %v362 = vld.sshfl [vmem:[#allocation1 + $0x28] sm:$0xff pattern:$0x75316420]
      %v363 = vld.sshfl [vmem:[#allocation1 + $0x30] sm:$0xff pattern:$0x75316420]
      %v364 = vld.sshfl [vmem:[#allocation1 + $0x38] sm:$0xff pattern:$0x75316420]
      %365 = vst [vmem:[#allocation1] ss:$2 sm:$0xff] %v314
      %366 = vst [vmem:[%s343] ss:$2 sm:$0xff] %v316
      %367 = vst [vmem:[%s345] ss:$2 sm:$0xff] %v315
      %368 = vst [vmem:[%s347] ss:$2 sm:$0xff] %v317
      %v369 = vld.sshfl [vmem:[#allocation1] sm:$0xff pattern:$0x75316420]
      %v370 = vld.sshfl [vmem:[#allocation1 + $0x8] sm:$0xff pattern:$0x75316420]
      %v371 = vld.sshfl [vmem:[#allocation1 + $0x10] sm:$0xff pattern:$0x75316420]
      %v372 = vld.sshfl [vmem:[#allocation1 + $0x18] sm:$0xff pattern:$0x75316420]
      %373 = vst [vmem:[%s353] ss:$2 sm:$0xff] %v318
      %374 = vst [vmem:[%s355] ss:$2 sm:$0xff] %v320
      %375 = vst [vmem:[%s357] ss:$2 sm:$0xff] %v319
      %376 = vst [vmem:[%s359] ss:$2 sm:$0xff] %v321
      %v377 = vld.sshfl [vmem:[#allocation1 + $0x20] sm:$0xff pattern:$0x75316420]
      %v378 = vld.sshfl [vmem:[#allocation1 + $0x28] sm:$0xff pattern:$0x75316420]
      %v379 = vld.sshfl [vmem:[#allocation1 + $0x30] sm:$0xff pattern:$0x75316420]
      %v380 = vld.sshfl [vmem:[#allocation1 + $0x38] sm:$0xff pattern:$0x75316420]
      %v397 = vadd.f32 %v349, %v361
      %v398 = vadd.f32 %v397, %v369
      %v399 = vadd.f32 %v398, %v377
      %v400 = vadd.f32 %v350, %v362
      %v401 = vadd.f32 %v400, %v370
      %v402 = vadd.f32 %v401, %v378
      %v403 = vadd.f32 %v351, %v363
      %v404 = vadd.f32 %v403, %v371
      %v405 = vadd.f32 %v404, %v379
      %v406 = vadd.f32 %v352, %v364
      %v407 = vadd.f32 %v406, %v372
      %v408 = vadd.f32 %v407, %v380
      %v409 = vadd.f32 %v322, %v399
      %v410 = vadd.f32 %v323, %v402
      %v411 = vadd.f32 %v324, %v405
      %v412 = vadd.f32 %v325, %v408
      %413 = vst [vmem:[#allocation2] sm:$0xff] %v409
      %414 = vst [vmem:[#allocation2 + $0x8] sm:$0xff] %v410
      %415 = vst [vmem:[#allocation2 + $0x10] sm:$0xff] %v411
      %416 = vst [vmem:[#allocation2 + $0x18] sm:$0xff] %v412
      %v417 = vld [vmem:[#allocation3] sm:$0xff]
      %v418 = vld [vmem:[#allocation3 + $0x8] sm:$0xff]
      %v419 = vld [vmem:[#allocation3 + $0x10] sm:$0xff]
      %v420 = vld [vmem:[#allocation3 + $0x18] sm:$0xff]
      %v421 = vsel %vm130, 1, 0
      %v422 = vsel %vm131, 1, 0
      %v423 = vsel %vm132, 1, 0
      %v424 = vsel %vm133, 1, 0
      %v425 = vsel %vm134, 1, 0
      %v426 = vsel %vm135, 1, 0
      %v427 = vsel %vm136, 1, 0
      %v428 = vsel %vm137, 1, 0
      %v429 = vsel %vm138, 1, 0
      %v430 = vsel %vm139, 1, 0
      %v431 = vsel %vm140, 1, 0
      %v432 = vsel %vm141, 1, 0
      %v433 = vsel %vm142, 1, 0
      %v434 = vsel %vm143, 1, 0
      %v435 = vsel %vm144, 1, 0
      %v436 = vsel %vm145, 1, 0
      %v437 = vcvt.s32.f32 %v421
      %v438 = vcvt.s32.f32 %v422
      %v439 = vcvt.s32.f32 %v423
      %v440 = vcvt.s32.f32 %v424
      %v441 = vcvt.s32.f32 %v425
      %v442 = vcvt.s32.f32 %v426
      %v443 = vcvt.s32.f32 %v427
      %v444 = vcvt.s32.f32 %v428
      %v445 = vcvt.s32.f32 %v429
      %v446 = vcvt.s32.f32 %v430
      %v447 = vcvt.s32.f32 %v431
      %v448 = vcvt.s32.f32 %v432
      %v449 = vcvt.s32.f32 %v433
      %v450 = vcvt.s32.f32 %v434
      %v451 = vcvt.s32.f32 %v435
      %v452 = vcvt.s32.f32 %v436
      %469 = vst [vmem:[#allocation1] ss:$2 sm:$0xff] %v437
      %s470 = scalar_lea.vmem [#allocation1], 1
      %471 = vst [vmem:[%s470] ss:$2 sm:$0xff] %v439
      %s472 = scalar_lea.vmem [#allocation1], 16
      %473 = vst [vmem:[%s472] ss:$2 sm:$0xff] %v438
      %s474 = scalar_lea.vmem [#allocation1], 17
      %475 = vst [vmem:[%s474] ss:$2 sm:$0xff] %v440
      %v476 = vld.sshfl [vmem:[#allocation1] sm:$0xff pattern:$0x75316420]
      %v477 = vld.sshfl [vmem:[#allocation1 + $0x8] sm:$0xff pattern:$0x75316420]
      %v478 = vld.sshfl [vmem:[#allocation1 + $0x10] sm:$0xff pattern:$0x75316420]
      %v479 = vld.sshfl [vmem:[#allocation1 + $0x18] sm:$0xff pattern:$0x75316420]
      %s480 = scalar_lea.vmem [#allocation1], 32
      %481 = vst [vmem:[%s480] ss:$2 sm:$0xff] %v441
      %s482 = scalar_lea.vmem [#allocation1], 33
      %483 = vst [vmem:[%s482] ss:$2 sm:$0xff] %v443
      %s484 = scalar_lea.vmem [#allocation1], 48
      %485 = vst [vmem:[%s484] ss:$2 sm:$0xff] %v442
      %s486 = scalar_lea.vmem [#allocation1], 49
      %487 = vst [vmem:[%s486] ss:$2 sm:$0xff] %v444
      %v488 = vld.sshfl [vmem:[#allocation1 + $0x20] sm:$0xff pattern:$0x75316420]
      %v489 = vld.sshfl [vmem:[#allocation1 + $0x28] sm:$0xff pattern:$0x75316420]
      %v490 = vld.sshfl [vmem:[#allocation1 + $0x30] sm:$0xff pattern:$0x75316420]
      %v491 = vld.sshfl [vmem:[#allocation1 + $0x38] sm:$0xff pattern:$0x75316420]
      %492 = vst [vmem:[#allocation1] ss:$2 sm:$0xff] %v445
      %493 = vst [vmem:[%s470] ss:$2 sm:$0xff] %v447
      %494 = vst [vmem:[%s472] ss:$2 sm:$0xff] %v446
      %495 = vst [vmem:[%s474] ss:$2 sm:$0xff] %v448
      %v496 = vld.sshfl [vmem:[#allocation1] sm:$0xff pattern:$0x75316420]
      %v497 = vld.sshfl [vmem:[#allocation1 + $0x8] sm:$0xff pattern:$0x75316420]
      %v498 = vld.sshfl [vmem:[#allocation1 + $0x10] sm:$0xff pattern:$0x75316420]
      %v499 = vld.sshfl [vmem:[#allocation1 + $0x18] sm:$0xff pattern:$0x75316420]
      %500 = vst [vmem:[%s480] ss:$2 sm:$0xff] %v449
      %501 = vst [vmem:[%s482] ss:$2 sm:$0xff] %v451
      %502 = vst [vmem:[%s484] ss:$2 sm:$0xff] %v450
      %503 = vst [vmem:[%s486] ss:$2 sm:$0xff] %v452
      %v504 = vld.sshfl [vmem:[#allocation1 + $0x20] sm:$0xff pattern:$0x75316420]
      %v505 = vld.sshfl [vmem:[#allocation1 + $0x28] sm:$0xff pattern:$0x75316420]
      %v506 = vld.sshfl [vmem:[#allocation1 + $0x30] sm:$0xff pattern:$0x75316420]
      %v507 = vld.sshfl [vmem:[#allocation1 + $0x38] sm:$0xff pattern:$0x75316420]
      %v524 = vadd.f32 %v476, %v488
      %v525 = vadd.f32 %v524, %v496
      %v526 = vadd.f32 %v525, %v504
      %v527 = vadd.f32 %v477, %v489
      %v528 = vadd.f32 %v527, %v497
      %v529 = vadd.f32 %v528, %v505
      %v530 = vadd.f32 %v478, %v490
      %v531 = vadd.f32 %v530, %v498
      %v532 = vadd.f32 %v531, %v506
      %v533 = vadd.f32 %v479, %v491
      %v534 = vadd.f32 %v533, %v499
      %v535 = vadd.f32 %v534, %v507
      %v536 = vadd.f32 %v417, %v526
      %v537 = vadd.f32 %v418, %v529
      %v538 = vadd.f32 %v419, %v532
      %v539 = vadd.f32 %v420, %v535
      %540 = vst [vmem:[#allocation3] sm:$0xff] %v536
      %541 = vst [vmem:[#allocation3 + $0x8] sm:$0xff] %v537
      %542 = vst [vmem:[#allocation3 + $0x10] sm:$0xff] %v538
      %543 = vst [vmem:[#allocation3 + $0x18] sm:$0xff] %v539
    $region25: #{tpu_custom_call.1} parent=1 // pred_fallthru
      _
    %p544 = scmp.gt.s32.totalorder %s93, 0
    %p545 = scmp.lt.s32.totalorder %s93, 32
    %p546 = pnand %p544, %p545
    %p547 = pneg %p546
    // Predicated region
    $region26: #{tpu_custom_call.1} parent=1 // pred_check
      _
    $region27: #{tpu_custom_call.1} parent=1 // pred_check_branch
      %549 = sbr.rel (%p546) target = $region29
    $region28: #{tpu_custom_call.1} parent=1 // pred_region
      %v550 = vlaneseq
      %v551 = vshrl.u32 %v550, 7
      %v552 = vadd.s32 %v551, 8
      %v553 = vadd.s32 %v551, 16
      %v554 = vadd.s32 %v551, 24
      %v555 = vstv %s93
      %vm556 = vcmp.lt.s32.totalorder %v551, %v555
      %vm557 = vcmp.lt.s32.totalorder %v552, %v555
      %vm558 = vcmp.lt.s32.totalorder %v553, %v555
      %vm559 = vcmp.lt.s32.totalorder %v554, %v555
      %v560 = vld [vmem:[#allocation4] sm:$0xff]
      %v561 = vld [vmem:[#allocation4 + $0x8] sm:$0xff]
      %v562 = vld [vmem:[#allocation4 + $0x10] sm:$0xff]
      %v563 = vld [vmem:[#allocation4 + $0x18] sm:$0xff]
      %v564 = vld [vmem:[#allocation4 + $0x20] sm:$0xff]
      %v565 = vld [vmem:[#allocation4 + $0x28] sm:$0xff]
      %v566 = vld [vmem:[#allocation4 + $0x30] sm:$0xff]
      %v567 = vld [vmem:[#allocation4 + $0x38] sm:$0xff]
      %v568 = vld [vmem:[#allocation4 + $0x40] sm:$0xff]
      %v569 = vld [vmem:[#allocation4 + $0x48] sm:$0xff]
      %v570 = vld [vmem:[#allocation4 + $0x50] sm:$0xff]
      %v571 = vld [vmem:[#allocation4 + $0x58] sm:$0xff]
      %v572 = vld [vmem:[#allocation4 + $0x60] sm:$0xff]
      %v573 = vld [vmem:[#allocation4 + $0x68] sm:$0xff]
      %v574 = vld [vmem:[#allocation4 + $0x70] sm:$0xff]
      %v575 = vld [vmem:[#allocation4 + $0x78] sm:$0xff]
      %592 = vst [vmem:[#allocation1] ss:$2 sm:$0xff] %v560
      %s593 = scalar_lea.vmem [#allocation1], 1
      %594 = vst [vmem:[%s593] ss:$2 sm:$0xff] %v562
      %s595 = scalar_lea.vmem [#allocation1], 16
      %596 = vst [vmem:[%s595] ss:$2 sm:$0xff] %v561
      %s597 = scalar_lea.vmem [#allocation1], 17
      %598 = vst [vmem:[%s597] ss:$2 sm:$0xff] %v563
      %s599 = scalar_lea.vmem [#allocation1], 32
      %600 = vst [vmem:[%s599] ss:$2 sm:$0xff] %v564
      %s601 = scalar_lea.vmem [#allocation1], 33
      %602 = vst [vmem:[%s601] ss:$2 sm:$0xff] %v566
      %s603 = scalar_lea.vmem [#allocation1], 48
      %604 = vst [vmem:[%s603] ss:$2 sm:$0xff] %v565
      %s605 = scalar_lea.vmem [#allocation1], 49
      %606 = vst [vmem:[%s605] ss:$2 sm:$0xff] %v567
      %v607 = vld.sshfl [vmem:[#allocation1] sm:$0xff pattern:$0x75316420]
      %v608 = vld.sshfl [vmem:[#allocation1 + $0x8] sm:$0xff pattern:$0x75316420]
      %v609 = vld.sshfl [vmem:[#allocation1 + $0x10] sm:$0xff pattern:$0x75316420]
      %v610 = vld.sshfl [vmem:[#allocation1 + $0x18] sm:$0xff pattern:$0x75316420]
      %v611 = vld.sshfl [vmem:[#allocation1 + $0x20] sm:$0xff pattern:$0x75316420]
      %v612 = vld.sshfl [vmem:[#allocation1 + $0x28] sm:$0xff pattern:$0x75316420]
      %v613 = vld.sshfl [vmem:[#allocation1 + $0x30] sm:$0xff pattern:$0x75316420]
      %v614 = vld.sshfl [vmem:[#allocation1 + $0x38] sm:$0xff pattern:$0x75316420]
      %615 = vst [vmem:[#allocation1] ss:$2 sm:$0xff] %v568
      %616 = vst [vmem:[%s593] ss:$2 sm:$0xff] %v570
      %617 = vst [vmem:[%s595] ss:$2 sm:$0xff] %v569
      %618 = vst [vmem:[%s597] ss:$2 sm:$0xff] %v571
      %619 = vst [vmem:[%s599] ss:$2 sm:$0xff] %v572
      %620 = vst [vmem:[%s601] ss:$2 sm:$0xff] %v574
      %621 = vst [vmem:[%s603] ss:$2 sm:$0xff] %v573
      %622 = vst [vmem:[%s605] ss:$2 sm:$0xff] %v575
      %v623 = vld.sshfl [vmem:[#allocation1] sm:$0xff pattern:$0x75316420]
      %v624 = vld.sshfl [vmem:[#allocation1 + $0x8] sm:$0xff pattern:$0x75316420]
      %v625 = vld.sshfl [vmem:[#allocation1 + $0x10] sm:$0xff pattern:$0x75316420]
      %v626 = vld.sshfl [vmem:[#allocation1 + $0x18] sm:$0xff pattern:$0x75316420]
      %v627 = vld.sshfl [vmem:[#allocation1 + $0x20] sm:$0xff pattern:$0x75316420]
      %v628 = vld.sshfl [vmem:[#allocation1 + $0x28] sm:$0xff pattern:$0x75316420]
      %v629 = vld.sshfl [vmem:[#allocation1 + $0x30] sm:$0xff pattern:$0x75316420]
      %v630 = vld.sshfl [vmem:[#allocation1 + $0x38] sm:$0xff pattern:$0x75316420]
      %v647 = vsel %vm556, %v607, 0.0
      %v648 = vsel %vm556, %v608, 0.0
      %v649 = vsel %vm556, %v609, 0.0
      %v650 = vsel %vm556, %v610, 0.0
      %v651 = vsel %vm557, %v611, 0.0
      %v652 = vsel %vm557, %v612, 0.0
      %v653 = vsel %vm557, %v613, 0.0
      %v654 = vsel %vm557, %v614, 0.0
      %v655 = vsel %vm558, %v623, 0.0
      %v656 = vsel %vm558, %v624, 0.0
      %v657 = vsel %vm558, %v625, 0.0
      %v658 = vsel %vm558, %v626, 0.0
      %v659 = vsel %vm559, %v627, 0.0
      %v660 = vsel %vm559, %v628, 0.0
      %v661 = vsel %vm559, %v629, 0.0
      %v662 = vsel %vm559, %v630, 0.0
      %v663 = vld [vmem:[#allocation7] sm:$0xff]
      %v664 = vld [vmem:[#allocation7 + $0x8] sm:$0xff]
      %v665 = vld [vmem:[#allocation7 + $0x10] sm:$0xff]
      %v666 = vld [vmem:[#allocation7 + $0x18] sm:$0xff]
      %v667 = vld [vmem:[#allocation7 + $0x20] sm:$0xff]
      %v668 = vld [vmem:[#allocation7 + $0x28] sm:$0xff]
      %v669 = vld [vmem:[#allocation7 + $0x30] sm:$0xff]
      %v670 = vld [vmem:[#allocation7 + $0x38] sm:$0xff]
      %v671 = vld [vmem:[#allocation7 + $0x40] sm:$0xff]
      %v672 = vld [vmem:[#allocation7 + $0x48] sm:$0xff]
      %v673 = vld [vmem:[#allocation7 + $0x50] sm:$0xff]
      %v674 = vld [vmem:[#allocation7 + $0x58] sm:$0xff]
      %v675 = vld [vmem:[#allocation7 + $0x60] sm:$0xff]
      %v676 = vld [vmem:[#allocation7 + $0x68] sm:$0xff]
      %v677 = vld [vmem:[#allocation7 + $0x70] sm:$0xff]
      %v678 = vld [vmem:[#allocation7 + $0x78] sm:$0xff]
      %695 = vst [vmem:[#allocation1] ss:$2 sm:$0xff] %v663
      %s696 = scalar_lea.vmem [#allocation1], 1
      %697 = vst [vmem:[%s696] ss:$2 sm:$0xff] %v665
      %s698 = scalar_lea.vmem [#allocation1], 16
      %699 = vst [vmem:[%s698] ss:$2 sm:$0xff] %v664
      %s700 = scalar_lea.vmem [#allocation1], 17
      %701 = vst [vmem:[%s700] ss:$2 sm:$0xff] %v666
      %s702 = scalar_lea.vmem [#allocation1], 32
      %703 = vst [vmem:[%s702] ss:$2 sm:$0xff] %v667
      %s704 = scalar_lea.vmem [#allocation1], 33
      %705 = vst [vmem:[%s704] ss:$2 sm:$0xff] %v669
      %s706 = scalar_lea.vmem [#allocation1], 48
      %707 = vst [vmem:[%s706] ss:$2 sm:$0xff] %v668
      %s708 = scalar_lea.vmem [#allocation1], 49
      %709 = vst [vmem:[%s708] ss:$2 sm:$0xff] %v670
      %v710 = vld.sshfl [vmem:[#allocation1] sm:$0xff pattern:$0x75316420]
      %v711 = vld.sshfl [vmem:[#allocation1 + $0x8] sm:$0xff pattern:$0x75316420]
      %v712 = vld.sshfl [vmem:[#allocation1 + $0x10] sm:$0xff pattern:$0x75316420]
      %v713 = vld.sshfl [vmem:[#allocation1 + $0x18] sm:$0xff pattern:$0x75316420]
      %v714 = vld.sshfl [vmem:[#allocation1 + $0x20] sm:$0xff pattern:$0x75316420]
      %v715 = vld.sshfl [vmem:[#allocation1 + $0x28] sm:$0xff pattern:$0x75316420]
      %v716 = vld.sshfl [vmem:[#allocation1 + $0x30] sm:$0xff pattern:$0x75316420]
      %v717 = vld.sshfl [vmem:[#allocation1 + $0x38] sm:$0xff pattern:$0x75316420]
      %718 = vst [vmem:[#allocation1] ss:$2 sm:$0xff] %v671
      %719 = vst [vmem:[%s696] ss:$2 sm:$0xff] %v673
      %720 = vst [vmem:[%s698] ss:$2 sm:$0xff] %v672
      %721 = vst [vmem:[%s700] ss:$2 sm:$0xff] %v674
      %722 = vst [vmem:[%s702] ss:$2 sm:$0xff] %v675
      %723 = vst [vmem:[%s704] ss:$2 sm:$0xff] %v677
      %724 = vst [vmem:[%s706] ss:$2 sm:$0xff] %v676
      %725 = vst [vmem:[%s708] ss:$2 sm:$0xff] %v678
      %v726 = vld.sshfl [vmem:[#allocation1] sm:$0xff pattern:$0x75316420]
      %v727 = vld.sshfl [vmem:[#allocation1 + $0x8] sm:$0xff pattern:$0x75316420]
      %v728 = vld.sshfl [vmem:[#allocation1 + $0x10] sm:$0xff pattern:$0x75316420]
      %v729 = vld.sshfl [vmem:[#allocation1 + $0x18] sm:$0xff pattern:$0x75316420]
      %v730 = vld.sshfl [vmem:[#allocation1 + $0x20] sm:$0xff pattern:$0x75316420]
      %v731 = vld.sshfl [vmem:[#allocation1 + $0x28] sm:$0xff pattern:$0x75316420]
      %v732 = vld.sshfl [vmem:[#allocation1 + $0x30] sm:$0xff pattern:$0x75316420]
      %v733 = vld.sshfl [vmem:[#allocation1 + $0x38] sm:$0xff pattern:$0x75316420]
      %v750 = vsel %vm556, %v710, 0.0
      %v751 = vsel %vm556, %v711, 0.0
      %v752 = vsel %vm556, %v712, 0.0
      %v753 = vsel %vm556, %v713, 0.0
      %v754 = vsel %vm557, %v714, 0.0
      %v755 = vsel %vm557, %v715, 0.0
      %v756 = vsel %vm557, %v716, 0.0
      %v757 = vsel %vm557, %v717, 0.0
      %v758 = vsel %vm558, %v726, 0.0
      %v759 = vsel %vm558, %v727, 0.0
      %v760 = vsel %vm558, %v728, 0.0
      %v761 = vsel %vm558, %v729, 0.0
      %v762 = vsel %vm559, %v730, 0.0
      %v763 = vsel %vm559, %v731, 0.0
      %v764 = vsel %vm559, %v732, 0.0
      %v765 = vsel %vm559, %v733, 0.0
      %vm766 = vcmp.eq.f32.partialorder %v750, 1.0
      %vm767 = vcmp.eq.f32.partialorder %v751, 1.0
      %vm768 = vcmp.eq.f32.partialorder %v752, 1.0
      %vm769 = vcmp.eq.f32.partialorder %v753, 1.0
      %vm770 = vcmp.eq.f32.partialorder %v754, 1.0
      %vm771 = vcmp.eq.f32.partialorder %v755, 1.0
      %vm772 = vcmp.eq.f32.partialorder %v756, 1.0
      %vm773 = vcmp.eq.f32.partialorder %v757, 1.0
      %vm774 = vcmp.eq.f32.partialorder %v758, 1.0
      %vm775 = vcmp.eq.f32.partialorder %v759, 1.0
      %vm776 = vcmp.eq.f32.partialorder %v760, 1.0
      %vm777 = vcmp.eq.f32.partialorder %v761, 1.0
      %vm778 = vcmp.eq.f32.partialorder %v762, 1.0
      %vm779 = vcmp.eq.f32.partialorder %v763, 1.0
      %vm780 = vcmp.eq.f32.partialorder %v764, 1.0
      %vm781 = vcmp.eq.f32.partialorder %v765, 1.0
      %v782 = vsub.f32 1.0, %v647
      %v783 = vsub.f32 1.0, %v648
      %v784 = vsub.f32 1.0, %v649
      %v785 = vsub.f32 1.0, %v650
      %v786 = vsub.f32 1.0, %v651
      %v787 = vsub.f32 1.0, %v652
      %v788 = vsub.f32 1.0, %v653
      %v789 = vsub.f32 1.0, %v654
      %v790 = vsub.f32 1.0, %v655
      %v791 = vsub.f32 1.0, %v656
      %v792 = vsub.f32 1.0, %v657
      %v793 = vsub.f32 1.0, %v658
      %v794 = vsub.f32 1.0, %v659
      %v795 = vsub.f32 1.0, %v660
      %v796 = vsub.f32 1.0, %v661
      %v797 = vsub.f32 1.0, %v662
      %v798 = vsub.f32 1.0, %v750
      %v799 = vsub.f32 1.0, %v751
      %v800 = vsub.f32 1.0, %v752
      %v801 = vsub.f32 1.0, %v753
      %v802 = vsub.f32 1.0, %v754
      %v803 = vsub.f32 1.0, %v755
      %v804 = vsub.f32 1.0, %v756
      %v805 = vsub.f32 1.0, %v757
      %v806 = vsub.f32 1.0, %v758
      %v807 = vsub.f32 1.0, %v759
      %v808 = vsub.f32 1.0, %v760
      %v809 = vsub.f32 1.0, %v761
      %v810 = vsub.f32 1.0, %v762
      %v811 = vsub.f32 1.0, %v763
      %v812 = vsub.f32 1.0, %v764
      %v813 = vsub.f32 1.0, %v765
      %v814 = vmax.f32 %v798, 0.0
      %v815 = vmax.f32 %v799, 0.0
      %v816 = vmax.f32 %v800, 0.0
      %v817 = vmax.f32 %v801, 0.0
      %v818 = vmax.f32 %v802, 0.0
      %v819 = vmax.f32 %v803, 0.0
      %v820 = vmax.f32 %v804, 0.0
      %v821 = vmax.f32 %v805, 0.0
      %v822 = vmax.f32 %v806, 0.0
      %v823 = vmax.f32 %v807, 0.0
      %v824 = vmax.f32 %v808, 0.0
      %v825 = vmax.f32 %v809, 0.0
      %v826 = vmax.f32 %v810, 0.0
      %v827 = vmax.f32 %v811, 0.0
      %v828 = vmax.f32 %v812, 0.0
      %v829 = vmax.f32 %v813, 0.0
      %v830 = vmul.f32 %v814, %v814
      %v831 = vmul.f32 %v815, %v815
      %v832 = vmul.f32 %v816, %v816
      %v833 = vmul.f32 %v817, %v817
      %v834 = vmul.f32 %v818, %v818
      %v835 = vmul.f32 %v819, %v819
      %v836 = vmul.f32 %v820, %v820
      %v837 = vmul.f32 %v821, %v821
      %v838 = vmul.f32 %v822, %v822
      %v839 = vmul.f32 %v823, %v823
      %v840 = vmul.f32 %v824, %v824
      %v841 = vmul.f32 %v825, %v825
      %v842 = vmul.f32 %v826, %v826
      %v843 = vmul.f32 %v827, %v827
      %v844 = vmul.f32 %v828, %v828
      %v845 = vmul.f32 %v829, %v829
      %v846 = vmul.f32 %v647, %v830
      %v847 = vmul.f32 %v648, %v831
      %v848 = vmul.f32 %v649, %v832
      %v849 = vmul.f32 %v650, %v833
      %v850 = vmul.f32 %v651, %v834
      %v851 = vmul.f32 %v652, %v835
      %v852 = vmul.f32 %v653, %v836
      %v853 = vmul.f32 %v654, %v837
      %v854 = vmul.f32 %v655, %v838
      %v855 = vmul.f32 %v656, %v839
      %v856 = vmul.f32 %v657, %v840
      %v857 = vmul.f32 %v658, %v841
      %v858 = vmul.f32 %v659, %v842
      %v859 = vmul.f32 %v660, %v843
      %v860 = vmul.f32 %v661, %v844
      %v861 = vmul.f32 %v662, %v845
      %v862 = vsel %vm766, %v782, %v846
      %v863 = vsel %vm767, %v783, %v847
      %v864 = vsel %vm768, %v784, %v848
      %v865 = vsel %vm769, %v785, %v849
      %v866 = vsel %vm770, %v786, %v850
      %v867 = vsel %vm771, %v787, %v851
      %v868 = vsel %vm772, %v788, %v852
      %v869 = vsel %vm773, %v789, %v853
      %v870 = vsel %vm774, %v790, %v854
      %v871 = vsel %vm775, %v791, %v855
      %v872 = vsel %vm776, %v792, %v856
      %v873 = vsel %vm777, %v793, %v857
      %v874 = vsel %vm778, %v794, %v858
      %v875 = vsel %vm779, %v795, %v859
      %v876 = vsel %vm780, %v796, %v860
      %v877 = vsel %vm781, %v797, %v861
      %v878 = vsel %vm766, %v647, %v782
      %v879 = vsel %vm767, %v648, %v783
      %v880 = vsel %vm768, %v649, %v784
      %v881 = vsel %vm769, %v650, %v785
      %v882 = vsel %vm770, %v651, %v786
      %v883 = vsel %vm771, %v652, %v787
      %v884 = vsel %vm772, %v653, %v788
      %v885 = vsel %vm773, %v654, %v789
      %v886 = vsel %vm774, %v655, %v790
      %v887 = vsel %vm775, %v656, %v791
      %v888 = vsel %vm776, %v657, %v792
      %v889 = vsel %vm777, %v658, %v793
      %v890 = vsel %vm778, %v659, %v794
      %v891 = vsel %vm779, %v660, %v795
      %v892 = vsel %vm780, %v661, %v796
      %v893 = vsel %vm781, %v662, %v797
      %v894 = vlog2.pop %v878
      %v895 = vmul.f32 %v894, 0.6931472
      %v896 = vlog2.pop %v879
      %v897 = vmul.f32 %v896, 0.6931472
      %v898 = vlog2.pop %v880
      %v899 = vmul.f32 %v898, 0.6931472
      %v900 = vlog2.pop %v881
      %v901 = vmul.f32 %v900, 0.6931472
      %v902 = vlog2.pop %v882
      %v903 = vmul.f32 %v902, 0.6931472
      %v904 = vlog2.pop %v883
      %v905 = vmul.f32 %v904, 0.6931472
      %v906 = vlog2.pop %v884
      %v907 = vmul.f32 %v906, 0.6931472
      %v908 = vlog2.pop %v885
      %v909 = vmul.f32 %v908, 0.6931472
      %v910 = vlog2.pop %v886
      %v911 = vmul.f32 %v910, 0.6931472
      %v912 = vlog2.pop %v887
      %v913 = vmul.f32 %v912, 0.6931472
      %v914 = vlog2.pop %v888
      %v915 = vmul.f32 %v914, 0.6931472
      %v916 = vlog2.pop %v889
      %v917 = vmul.f32 %v916, 0.6931472
      %v918 = vlog2.pop %v890
      %v919 = vmul.f32 %v918, 0.6931472
      %v920 = vlog2.pop %v891
      %v921 = vmul.f32 %v920, 0.6931472
      %v922 = vlog2.pop %v892
      %v923 = vmul.f32 %v922, 0.6931472
      %v924 = vlog2.pop %v893
      %v925 = vmul.f32 %v924, 0.6931472
      %v926 = vmul.f32 %v862, %v862
      %v927 = vmul.f32 %v863, %v863
      %v928 = vmul.f32 %v864, %v864
      %v929 = vmul.f32 %v865, %v865
      %v930 = vmul.f32 %v866, %v866
      %v931 = vmul.f32 %v867, %v867
      %v932 = vmul.f32 %v868, %v868
      %v933 = vmul.f32 %v869, %v869
      %v934 = vmul.f32 %v870, %v870
      %v935 = vmul.f32 %v871, %v871
      %v936 = vmul.f32 %v872, %v872
      %v937 = vmul.f32 %v873, %v873
      %v938 = vmul.f32 %v874, %v874
      %v939 = vmul.f32 %v875, %v875
      %v940 = vmul.f32 %v876, %v876
      %v941 = vmul.f32 %v877, %v877
      %v942 = vmul.f32 %v895, %v926
      %v943 = vmul.f32 %v897, %v927
      %v944 = vmul.f32 %v899, %v928
      %v945 = vmul.f32 %v901, %v929
      %v946 = vmul.f32 %v903, %v930
      %v947 = vmul.f32 %v905, %v931
      %v948 = vmul.f32 %v907, %v932
      %v949 = vmul.f32 %v909, %v933
      %v950 = vmul.f32 %v911, %v934
      %v951 = vmul.f32 %v913, %v935
      %v952 = vmul.f32 %v915, %v936
      %v953 = vmul.f32 %v917, %v937
      %v954 = vmul.f32 %v919, %v938
      %v955 = vmul.f32 %v921, %v939
      %v956 = vmul.f32 %v923, %v940
      %v957 = vmul.f32 %v925, %v941
      %v958 = vld [vmem:[#allocation2] sm:$0xff]
      %v959 = vld [vmem:[#allocation2 + $0x8] sm:$0xff]
      %v960 = vld [vmem:[#allocation2 + $0x10] sm:$0xff]
      %v961 = vld [vmem:[#allocation2 + $0x18] sm:$0xff]
      %v962 = vadd.f32 %v942, %v946
      %v963 = vadd.f32 %v962, %v950
      %v964 = vadd.f32 %v963, %v954
      %v965 = vadd.f32 %v943, %v947
      %v966 = vadd.f32 %v965, %v951
      %v967 = vadd.f32 %v966, %v955
      %v968 = vadd.f32 %v944, %v948
      %v969 = vadd.f32 %v968, %v952
      %v970 = vadd.f32 %v969, %v956
      %v971 = vadd.f32 %v945, %v949
      %v972 = vadd.f32 %v971, %v953
      %v973 = vadd.f32 %v972, %v957
      %v974 = vadd.f32 %v958, %v964
      %v975 = vadd.f32 %v959, %v967
      %v976 = vadd.f32 %v960, %v970
      %v977 = vadd.f32 %v961, %v973
      %978 = vst [vmem:[#allocation2] sm:$0xff] %v974
      %979 = vst [vmem:[#allocation2 + $0x8] sm:$0xff] %v975
      %980 = vst [vmem:[#allocation2 + $0x10] sm:$0xff] %v976
      %981 = vst [vmem:[#allocation2 + $0x18] sm:$0xff] %v977
      %v982 = vld [vmem:[#allocation3] sm:$0xff]
      %v983 = vld [vmem:[#allocation3 + $0x8] sm:$0xff]
      %v984 = vld [vmem:[#allocation3 + $0x10] sm:$0xff]
      %v985 = vld [vmem:[#allocation3 + $0x18] sm:$0xff]
      %v986 = vsel %vm766, 1, 0
      %v987 = vsel %vm767, 1, 0
      %v988 = vsel %vm768, 1, 0
      %v989 = vsel %vm769, 1, 0
      %v990 = vsel %vm770, 1, 0
      %v991 = vsel %vm771, 1, 0
      %v992 = vsel %vm772, 1, 0
      %v993 = vsel %vm773, 1, 0
      %v994 = vsel %vm774, 1, 0
      %v995 = vsel %vm775, 1, 0
      %v996 = vsel %vm776, 1, 0
      %v997 = vsel %vm777, 1, 0
      %v998 = vsel %vm778, 1, 0
      %v999 = vsel %vm779, 1, 0
      %v1000 = vsel %vm780, 1, 0
      %v1001 = vsel %vm781, 1, 0
      %v1002 = vcvt.s32.f32 %v986
      %v1003 = vcvt.s32.f32 %v987
      %v1004 = vcvt.s32.f32 %v988
      %v1005 = vcvt.s32.f32 %v989
      %v1006 = vcvt.s32.f32 %v990
      %v1007 = vcvt.s32.f32 %v991
      %v1008 = vcvt.s32.f32 %v992
      %v1009 = vcvt.s32.f32 %v993
      %v1010 = vcvt.s32.f32 %v994
      %v1011 = vcvt.s32.f32 %v995
      %v1012 = vcvt.s32.f32 %v996
      %v1013 = vcvt.s32.f32 %v997
      %v1014 = vcvt.s32.f32 %v998
      %v1015 = vcvt.s32.f32 %v999
      %v1016 = vcvt.s32.f32 %v1000
      %v1017 = vcvt.s32.f32 %v1001
      %v1018 = vadd.f32 %v1002, %v1006
      %v1019 = vadd.f32 %v1018, %v1010
      %v1020 = vadd.f32 %v1019, %v1014
      %v1021 = vadd.f32 %v1003, %v1007
      %v1022 = vadd.f32 %v1021, %v1011
      %v1023 = vadd.f32 %v1022, %v1015
      %v1024 = vadd.f32 %v1004, %v1008
      %v1025 = vadd.f32 %v1024, %v1012
      %v1026 = vadd.f32 %v1025, %v1016
      %v1027 = vadd.f32 %v1005, %v1009
      %v1028 = vadd.f32 %v1027, %v1013
      %v1029 = vadd.f32 %v1028, %v1017
      %v1030 = vadd.f32 %v982, %v1020
      %v1031 = vadd.f32 %v983, %v1023
      %v1032 = vadd.f32 %v984, %v1026
      %v1033 = vadd.f32 %v985, %v1029
      %1034 = vst [vmem:[#allocation3] sm:$0xff] %v1030
      %1035 = vst [vmem:[#allocation3 + $0x8] sm:$0xff] %v1031
      %1036 = vst [vmem:[#allocation3 + $0x10] sm:$0xff] %v1032
      %1037 = vst [vmem:[#allocation3 + $0x18] sm:$0xff] %v1033
    $region29: #{tpu_custom_call.1} parent=1 // pred_fallthru
      _
    // Predicated region
    $region30: #{tpu_custom_call.1} parent=1 // pred_check
      %p1038 = pneg %p79
    $region31: #{tpu_custom_call.1} parent=1 // pred_check_branch
      %1040 = sbr.rel (%p1038) target = $region33
    $region32: #{tpu_custom_call.1} parent=1 // pred_region
      %v1041 = vld [vmem:[#allocation2] sm:$0xff]
      %v1042 = vld [vmem:[#allocation2 + $0x8] sm:$0xff]
      %v1043 = vld [vmem:[#allocation2 + $0x10] sm:$0xff]
      %v1044 = vld [vmem:[#allocation2 + $0x18] sm:$0xff]
      %v1045 = vadd.f32 %v1041, %v1042
      %v1046 = vadd.f32 %v1045, %v1043
      %v1047 = vadd.f32 %v1046, %v1044
      %1048 = vadd.xlane.f32.xlu0 %v1047
      %v1049 = vpop.xlane.xlu0 %1048
      %v1050 = vrot.slane %v1049, 4
      %v1051 = vadd.f32 %v1049, %v1050
      %v1052 = vrot.slane %v1051, 2
      %v1053 = vadd.f32 %v1051, %v1052
      %v1054 = vrot.slane %v1053, 1
      %v1055 = vadd.f32 %v1053, %v1054
      %s1056 = vtos %v1055
      %s1057 = scalar_lea.smem [#allocation9], 0
      %1058 = sst [smem:[%s1057]] %s1056
      %v1059 = vld [vmem:[#allocation3] sm:$0xff]
      %v1060 = vld [vmem:[#allocation3 + $0x8] sm:$0xff]
      %v1061 = vld [vmem:[#allocation3 + $0x10] sm:$0xff]
      %v1062 = vld [vmem:[#allocation3 + $0x18] sm:$0xff]
      %v1063 = vadd.f32 %v1059, %v1060
      %v1064 = vadd.f32 %v1063, %v1061
      %v1065 = vadd.f32 %v1064, %v1062
      %1066 = vadd.xlane.f32.xlu0 %v1065
      %v1067 = vpop.xlane.xlu0 %1066
      %v1068 = vrot.slane %v1067, 4
      %v1069 = vadd.f32 %v1067, %v1068
      %v1070 = vrot.slane %v1069, 2
      %v1071 = vadd.f32 %v1069, %v1070
      %v1072 = vrot.slane %v1071, 1
      %v1073 = vadd.f32 %v1071, %v1072
      %s1074 = vtos %v1073
      %s1075 = scalar_lea.smem [#allocation10], 0
      %1076 = sst [smem:[%s1075]] %s1074
    $region33: #{tpu_custom_call.1} parent=1 // pred_fallthru
      _
    // Predicated region
    $region34: #{tpu_custom_call.1} parent=1 // pred_check
      _
    $region35: #{tpu_custom_call.1} parent=1 // pred_check_branch
      %1078 = sbr.rel (0) target = $region37
    $region36: #{tpu_custom_call.1} parent=1 // pred_region
      %1080 = vsyncadd [#allocation6], 0
      %s1082 = sshll.u32 %s2, 4
      %s1083 = int_to_ptr.hbm [resolvable:$true] %s1082
      %1085 = dma.smem_to_hbm [#allocation9], 16, %s1083, [#allocation6]
    $region37: #{tpu_custom_call.1} parent=1 // pred_fallthru
      _
    // Predicated region
    $region38: #{tpu_custom_call.1} parent=1 // pred_check
      _
    $region39: #{tpu_custom_call.1} parent=1 // pred_check_branch
      %1087 = sbr.rel (0) target = $region41
    $region40: #{tpu_custom_call.1} parent=1 // pred_region
      %1089 = vsyncadd [#allocation11], 0
      %s1091 = sshll.u32 %s3, 4
      %s1092 = int_to_ptr.hbm [resolvable:$true] %s1091
      %1094 = dma.smem_to_hbm [#allocation10], 16, %s1092, [#allocation11]
    $region41: #{tpu_custom_call.1} parent=1 // pred_fallthru
      _
    // Predicated region
    $region42: #{tpu_custom_call.1} parent=1 // pred_check
      _
    $region43: #{tpu_custom_call.1} parent=1 // pred_check_branch
      %1096 = sbr.rel (0) target = $region45
    $region44: #{tpu_custom_call.1} parent=1 // pred_region
      %1098 = dma.done [#allocation6], 16
    $region45: #{tpu_custom_call.1} parent=1 // pred_fallthru
      _
    // Predicated region
    $region46: #{tpu_custom_call.1} parent=1 // pred_check
      _
    $region47: #{tpu_custom_call.1} parent=1 // pred_check_branch
      %1100 = sbr.rel (0) target = $region49
    $region48: #{tpu_custom_call.1} parent=1 // pred_region
      %1102 = dma.done [#allocation11], 16
    $region49: #{tpu_custom_call.1} parent=1 // pred_fallthru
      _
    %1103 = sfence
    %1104 = vsyncpa [#allocation5], 1
    %1105 = vsyncpa [#allocation8], 1
    %1106 = vsyncpa [#allocation6], 1
    %1107 = vsyncpa [#allocation11], 1

</llo_original>
